<compile_context>
chip_gen: v6e
topology: v6e:2x2x1
jax: 0.10.0
libtpu: 0.0.40
codegen_flags: <defaults>
</compile_context>

<pallas_src>
import math

import jax
import jax.numpy as jnp
from jax.experimental import pallas as pl
from jax.experimental.pallas import tpu as pltpu

_LANES = 128
_CHUNK_ROWS = 32            # int8-mask native sublane tile; 4 f32 vregs / array / chunk


def _ssi_partials_kernel(pred_ref, targ_ref, mask_ref, out_ref):
    rows = pred_ref.shape[1]
    n_chunks = rows // _CHUNK_ROWS

    zeros = jnp.zeros((_CHUNK_ROWS, _LANES), jnp.float32)

    def _load(c):
        start = pl.multiple_of(c * _CHUNK_ROWS, _CHUNK_ROWS)
        sl = pl.ds(start, _CHUNK_ROWS)
        p = pred_ref[0, sl, :].astype(jnp.float32)
        t = targ_ref[0, sl, :].astype(jnp.float32)
        m = mask_ref[0, sl, :].astype(jnp.float32)   # int8 {0,1} -> f32, once per chunk
        return p, t, m

    # ---- Pass 1: normal-equation partial sums, chunked VPU accumulation ----
    def _pass1(c, accs):
        a00, a01, a11, b0, b1 = accs
        p, t, m = _load(c)
        mp = m * p
        mt = m * t
        return (a00 + mp * p, a01 + mp, a11 + m, b0 + mp * t, b1 + mt)

    a00, a01, a11, b0, b1 = jax.lax.fori_loop(
        0, n_chunks, _pass1, (zeros, zeros, zeros, zeros, zeros))

    # One cross-lane reduce per quantity (XLU) -- only here, not per element.
    a_00 = jnp.sum(a00)
    a_01 = jnp.sum(a01)
    a_11 = jnp.sum(a11)
    b_0 = jnp.sum(b0)
    b_1 = jnp.sum(b1)

    det = a_00 * a_11 - a_01 * a_01
    valid = det > 0.0                       # matches the PyTorch reference (det > 0)
    safe_det = jnp.where(valid, det, 1.0)
    scale = jnp.where(valid, (a_11 * b_0 - a_01 * b_1) / safe_det, 0.0)
    shift = jnp.where(valid, (-a_01 * b_0 + a_00 * b_1) / safe_det, 0.0)

    # Hoist the scalar broadcasts out of the chunk loop (no CSE of broadcasts).
    scale_v = jnp.broadcast_to(scale, (_CHUNK_ROWS, _LANES))
    shift_v = jnp.broadcast_to(shift, (_CHUNK_ROWS, _LANES))

    # ---- Pass 2: masked L1 numerator over the VMEM-resident block ----------
    def _pass2(c, acc):
        p, t, m = _load(c)
        mp = m * p
        mt = m * t
        # mask * |scale*p + shift - t| == |scale*mp + shift*m - mt| for mask in {0,1}
        return acc + jnp.abs(scale_v * mp + shift_v * m - mt)

    num_acc = jax.lax.fori_loop(0, n_chunks, _pass2, zeros)
    num = jnp.sum(num_acc)

    # Pack (numerator, mask-count) into one output slab: row 0 = num, row 1 = den.
    row = jax.lax.broadcasted_iota(jnp.int32, (8, _LANES), 0)
    slab = jnp.where(row == 0, num, jnp.where(row == 1, a_11, 0.0))
    out_ref[0] = slab


def ssi_loss_pallas(prediction, target, mask, interpolate=True):
    """prediction, target, mask: (B, 1, H, W) NCHW arrays (mask may be bool)."""
    if prediction.shape[-2:] != target.shape[-2:]:
        if interpolate:
            # TODO(synk): bilinear (align_corners=True) resize of `prediction`
            # to the target spatial size is not implemented here.
            raise NotImplementedError("interpolation path not implemented")
    assert prediction.shape == target.shape == mask.shape, (
        prediction.shape, target.shape, mask.shape)

    B = prediction.shape[0]
    HW = math.prod(prediction.shape[1:])              # C*H*W (C == 1)
    plane = _CHUNK_ROWS * _LANES                      # 4096-element granule
    padded = ((HW + plane - 1) // plane) * plane
    rows = padded // _LANES
    pad = padded - HW

    def _prep(x):
        x = jnp.reshape(x, (B, HW))
        if pad:
            # TODO(synk): when HW is not a multiple of 4096 this pad is an extra
            # HBM round trip; an in-kernel iota tail mask would avoid it.
            x = jnp.pad(x, ((0, 0), (0, pad)))        # padded region is masked out
        return jnp.reshape(x, (B, rows, _LANES))

    pred = _prep(prediction)                          # native dtype (f32/bf16/...)
    targ = _prep(target)
    msk = _prep(mask.astype(jnp.int8))                # 1 byte/element in HBM

    # Generation-aware VMEM budget: double-buffered input block + small extras.
    plane_bytes = rows * _LANES * (
        pred.dtype.itemsize + targ.dtype.itemsize + msk.dtype.itemsize)
    try:
        vmem_cap = int(pltpu.get_tpu_info().vmem_capacity_bytes)
    except Exception:                                  # pragma: no cover
        vmem_cap = 64 * 1024 * 1024                    # conservative (v7x per-TC)
    headroom = 8 * 1024 * 1024
    vmem_limit = int(min(vmem_cap - headroom,
                         max(4 * 1024 * 1024, 2 * plane_bytes + (2 << 20))))
    # TODO(synk): planes whose double-buffered footprint exceeds the budget need
    # a two-pass row-tiled fallback (partial sums + scalar-prefetched scale/shift).

    in_blk = pl.BlockSpec((1, rows, _LANES), lambda b: (b, 0, 0))
    out_blk = pl.BlockSpec((1, 8, _LANES), lambda b: (b, 0, 0))

    out = pl.pallas_call(
        _ssi_partials_kernel,
        out_shape=jax.ShapeDtypeStruct((B, 8, _LANES), jnp.float32),
        grid_spec=pltpu.PrefetchScalarGridSpec(
            num_scalar_prefetch=0,
            grid=(B,),
            in_specs=[in_blk, in_blk, in_blk],
            out_specs=out_blk,
        ),
        compiler_params=pltpu.CompilerParams(
            dimension_semantics=("parallel",),
            vmem_limit_bytes=vmem_limit,
        ),
    )(pred, targ, msk)

    # Tiny finalize in plain JAX: mean over all masked pixels of the batch.
    num = jnp.sum(out[:, 0, 0])
    den = jnp.sum(out[:, 1, 0])
    return num / den


def _ssi_loss_ref(prediction, target, mask):
    """Pure-JAX reference mirroring the PyTorch module (per-image scale/shift)."""
    B = prediction.shape[0]
    pred = prediction.reshape(B, -1).astype(jnp.float32)
    targ = target.reshape(B, -1).astype(jnp.float32)
    m = mask.reshape(B, -1).astype(jnp.float32)
    a_00 = jnp.sum(m * pred * pred, 1)
    a_01 = jnp.sum(m * pred, 1)
    a_11 = jnp.sum(m, 1)
    b_0 = jnp.sum(m * pred * targ, 1)
    b_1 = jnp.sum(m * targ, 1)
    det = a_00 * a_11 - a_01 * a_01
    valid = det > 0
    safe = jnp.where(valid, det, 1.0)
    x_0 = jnp.where(valid, (a_11 * b_0 - a_01 * b_1) / safe, 0.0)
    x_1 = jnp.where(valid, (-a_01 * b_0 + a_00 * b_1) / safe, 0.0)
    scaled = x_0[:, None] * pred + x_1[:, None]
    return jnp.sum(m * jnp.abs(scaled - targ)) / jnp.sum(m)


if __name__ == "__main__":
    key = jax.random.PRNGKey(0)
    k1, k2, k3 = jax.random.split(key, 3)

    B, C, H, W = 2, 1, 16, 16
    prediction = jax.random.uniform(k1, (B, C, H, W), jnp.float32, 0.1, 10.0)
    target = jax.random.uniform(k2, (B, C, H, W), jnp.float32, 0.1, 10.0)
    mask = (jax.random.uniform(k3, (B, C, H, W)) > 0.3)   # boolean mask

    loss = jax.block_until_ready(ssi_loss_pallas(prediction, target, mask))
    ref = jax.block_until_ready(_ssi_loss_ref(prediction, target, mask))
    assert jnp.allclose(loss, ref, rtol=1e-4, atol=1e-4), (loss, ref)

    print("KERNEL_OK")
</pallas_src>

<mosaic_0001>
module attributes {stable_mosaic.version = 11 : i64} {
  func.func @_ssi_partials_kernel(%arg0: i32, %arg1: memref<1x32x128xf32, #tpu.memory_space<vmem>>, %arg2: memref<1x32x128xf32, #tpu.memory_space<vmem>>, %arg3: memref<1x32x128xi8, #tpu.memory_space<vmem>>, %arg4: memref<1x8x128xf32, #tpu.memory_space<vmem>>) attributes {dimension_semantics = [#tpu.dimension_semantics<parallel>], iteration_bounds = array<i64: 2>, scalar_prefetch = 0 : i64, scratch_operands = 0 : i64, tpu.core_type = #tpu.core_type<tc>, window_params = [{transform_indices = @transform_0, window_bounds = array<i64: 1, 32, 128>}, {transform_indices = @transform_1, window_bounds = array<i64: 1, 32, 128>}, {transform_indices = @transform_2, window_bounds = array<i64: 1, 32, 128>}, {transform_indices = @transform_3, window_bounds = array<i64: 1, 8, 128>}]} {
    %cst = arith.constant 0.000000e+00 : f32
    %0 = vector.broadcast %cst : f32 to vector<32x128xf32>
    %c0_i32 = arith.constant 0 : i32
    %c32_i32 = arith.constant 32 : i32
    %1 = arith.muli %c0_i32, %c32_i32 : i32
    %2 = tpu.assume_multiple %1, 32 : i32
    %c0 = arith.constant 0 : index
    %3 = arith.index_cast %2 : i32 to index
    %c0_0 = arith.constant 0 : index
    %4 = vector.load %arg1[%c0, %3, %c0_0] : memref<1x32x128xf32, #tpu.memory_space<vmem>>, vector<1x32x128xf32>
    %5 = vector.shape_cast %4 : vector<1x32x128xf32> to vector<32x128xf32>
    %c0_1 = arith.constant 0 : index
    %6 = arith.index_cast %2 : i32 to index
    %c0_2 = arith.constant 0 : index
    %7 = vector.load %arg2[%c0_1, %6, %c0_2] : memref<1x32x128xf32, #tpu.memory_space<vmem>>, vector<1x32x128xf32>
    %8 = vector.shape_cast %7 : vector<1x32x128xf32> to vector<32x128xf32>
    %c0_3 = arith.constant 0 : index
    %9 = arith.index_cast %2 : i32 to index
    %c0_4 = arith.constant 0 : index
    %10 = vector.load %arg3[%c0_3, %9, %c0_4] : memref<1x32x128xi8, #tpu.memory_space<vmem>>, vector<1x32x128xi8>
    %11 = vector.shape_cast %10 : vector<1x32x128xi8> to vector<32x128xi8>
    %12 = arith.sitofp %11 : vector<32x128xi8> to vector<32x128xf32>
    %13 = arith.mulf %12, %5 : vector<32x128xf32>
    %14 = arith.mulf %12, %8 : vector<32x128xf32>
    %15 = arith.mulf %13, %5 : vector<32x128xf32>
    %16 = arith.addf %0, %15 : vector<32x128xf32>
    %17 = arith.addf %0, %13 : vector<32x128xf32>
    %18 = arith.addf %0, %12 : vector<32x128xf32>
    %19 = arith.mulf %13, %8 : vector<32x128xf32>
    %20 = arith.addf %0, %19 : vector<32x128xf32>
    %21 = arith.addf %0, %14 : vector<32x128xf32>
    %c1_i32 = arith.constant 1 : i32
    %22 = vector.shape_cast %16 : vector<32x128xf32> to vector<1x32x128xf32>
    %cst_5 = arith.constant dense<0.000000e+00> : vector<1xf32>
    %23 = vector.multi_reduction <add>, %22, %cst_5 [1, 2] : vector<1x32x128xf32> to vector<1xf32>
    %24 = vector.shape_cast %23 : vector<1xf32> to vector<1x1x1xf32>
    %25 = vector.extract %24[0, 0, 0] : f32 from vector<1x1x1xf32>
    %26 = vector.shape_cast %17 : vector<32x128xf32> to vector<1x32x128xf32>
    %cst_6 = arith.constant dense<0.000000e+00> : vector<1xf32>
    %27 = vector.multi_reduction <add>, %26, %cst_6 [1, 2] : vector<1x32x128xf32> to vector<1xf32>
    %28 = vector.shape_cast %27 : vector<1xf32> to vector<1x1x1xf32>
    %29 = vector.extract %28[0, 0, 0] : f32 from vector<1x1x1xf32>
    %30 = vector.shape_cast %18 : vector<32x128xf32> to vector<1x32x128xf32>
    %cst_7 = arith.constant dense<0.000000e+00> : vector<1xf32>
    %31 = vector.multi_reduction <add>, %30, %cst_7 [1, 2] : vector<1x32x128xf32> to vector<1xf32>
    %32 = vector.shape_cast %31 : vector<1xf32> to vector<1x1x1xf32>
    %33 = vector.extract %32[0, 0, 0] : f32 from vector<1x1x1xf32>
    %34 = vector.shape_cast %20 : vector<32x128xf32> to vector<1x32x128xf32>
    %cst_8 = arith.constant dense<0.000000e+00> : vector<1xf32>
    %35 = vector.multi_reduction <add>, %34, %cst_8 [1, 2] : vector<1x32x128xf32> to vector<1xf32>
    %36 = vector.shape_cast %35 : vector<1xf32> to vector<1x1x1xf32>
    %37 = vector.extract %36[0, 0, 0] : f32 from vector<1x1x1xf32>
    %38 = vector.shape_cast %21 : vector<32x128xf32> to vector<1x32x128xf32>
    %cst_9 = arith.constant dense<0.000000e+00> : vector<1xf32>
    %39 = vector.multi_reduction <add>, %38, %cst_9 [1, 2] : vector<1x32x128xf32> to vector<1xf32>
    %40 = vector.shape_cast %39 : vector<1xf32> to vector<1x1x1xf32>
    %41 = vector.extract %40[0, 0, 0] : f32 from vector<1x1x1xf32>
    %42 = arith.mulf %25, %33 : f32
    %43 = arith.mulf %29, %29 : f32
    %44 = arith.subf %42, %43 : f32
    %cst_10 = arith.constant 0.000000e+00 : f32
    %45 = arith.cmpf ogt, %44, %cst_10 : f32
    %cst_11 = arith.constant 1.000000e+00 : f32
    %46 = arith.select %45, %44, %cst_11 : f32
    %47 = arith.mulf %33, %37 : f32
    %48 = arith.mulf %29, %41 : f32
    %49 = arith.subf %47, %48 : f32
    %50 = arith.divf %49, %46 : f32
    %cst_12 = arith.constant 0.000000e+00 : f32
    %51 = arith.select %45, %50, %cst_12 : f32
    %cst_13 = arith.constant 0.000000e+00 : f32
    %52 = arith.subf %cst_13, %29 : f32
    %53 = arith.mulf %52, %37 : f32
    %54 = arith.mulf %25, %41 : f32
    %55 = arith.addf %53, %54 : f32
    %56 = arith.divf %55, %46 : f32
    %cst_14 = arith.constant 0.000000e+00 : f32
    %57 = arith.select %45, %56, %cst_14 : f32
    %58 = vector.broadcast %51 : f32 to vector<32x128xf32>
    %59 = vector.broadcast %57 : f32 to vector<32x128xf32>
    %c0_i32_15 = arith.constant 0 : i32
    %c32_i32_16 = arith.constant 32 : i32
    %60 = arith.muli %c0_i32_15, %c32_i32_16 : i32
    %61 = tpu.assume_multiple %60, 32 : i32
    %c0_17 = arith.constant 0 : index
    %62 = arith.index_cast %61 : i32 to index
    %c0_18 = arith.constant 0 : index
    %63 = vector.load %arg1[%c0_17, %62, %c0_18] : memref<1x32x128xf32, #tpu.memory_space<vmem>>, vector<1x32x128xf32>
    %64 = vector.shape_cast %63 : vector<1x32x128xf32> to vector<32x128xf32>
    %c0_19 = arith.constant 0 : index
    %65 = arith.index_cast %61 : i32 to index
    %c0_20 = arith.constant 0 : index
    %66 = vector.load %arg2[%c0_19, %65, %c0_20] : memref<1x32x128xf32, #tpu.memory_space<vmem>>, vector<1x32x128xf32>
    %67 = vector.shape_cast %66 : vector<1x32x128xf32> to vector<32x128xf32>
    %c0_21 = arith.constant 0 : index
    %68 = arith.index_cast %61 : i32 to index
    %c0_22 = arith.constant 0 : index
    %69 = vector.load %arg3[%c0_21, %68, %c0_22] : memref<1x32x128xi8, #tpu.memory_space<vmem>>, vector<1x32x128xi8>
    %70 = vector.shape_cast %69 : vector<1x32x128xi8> to vector<32x128xi8>
    %71 = arith.sitofp %70 : vector<32x128xi8> to vector<32x128xf32>
    %72 = arith.mulf %71, %64 : vector<32x128xf32>
    %73 = arith.mulf %71, %67 : vector<32x128xf32>
    %74 = arith.mulf %58, %72 : vector<32x128xf32>
    %75 = arith.mulf %59, %71 : vector<32x128xf32>
    %76 = arith.addf %74, %75 : vector<32x128xf32>
    %77 = arith.subf %76, %73 : vector<32x128xf32>
    %78 = math.absf %77 : vector<32x128xf32>
    %79 = arith.addf %0, %78 : vector<32x128xf32>
    %c1_i32_23 = arith.constant 1 : i32
    %80 = vector.shape_cast %79 : vector<32x128xf32> to vector<1x32x128xf32>
    %cst_24 = arith.constant dense<0.000000e+00> : vector<1xf32>
    %81 = vector.multi_reduction <add>, %80, %cst_24 [1, 2] : vector<1x32x128xf32> to vector<1xf32>
    %82 = vector.shape_cast %81 : vector<1xf32> to vector<1x1x1xf32>
    %83 = vector.extract %82[0, 0, 0] : f32 from vector<1x1x1xf32>
    %84 = tpu.iota {dimensions = array<i32: 0>} : vector<8x128xi32>
    %c0_i32_25 = arith.constant 0 : i32
    %85 = vector.broadcast %c0_i32_25 : i32 to vector<8x128xi32>
    %86 = arith.cmpi eq, %84, %85 : vector<8x128xi32>
    %c1_i32_26 = arith.constant 1 : i32
    %87 = vector.broadcast %c1_i32_26 : i32 to vector<8x128xi32>
    %88 = arith.cmpi eq, %84, %87 : vector<8x128xi32>
    %cst_27 = arith.constant 0.000000e+00 : f32
    %89 = vector.broadcast %33 : f32 to vector<8x128xf32>
    %90 = vector.broadcast %cst_27 : f32 to vector<8x128xf32>
    %91 = arith.select %88, %89, %90 : vector<8x128xi1>, vector<8x128xf32>
    %92 = vector.broadcast %83 : f32 to vector<8x128xf32>
    %93 = arith.select %86, %92, %91 : vector<8x128xi1>, vector<8x128xf32>
    %c0_28 = arith.constant 0 : index
    %c0_29 = arith.constant 0 : index
    %c0_30 = arith.constant 0 : index
    %94 = vector.load %arg4[%c0_28, %c0_29, %c0_30] : memref<1x8x128xf32, #tpu.memory_space<vmem>>, vector<1x8x128xf32>
    %95 = vector.shape_cast %94 : vector<1x8x128xf32> to vector<8x128xf32>
    %96 = vector.shape_cast %93 : vector<8x128xf32> to vector<1x8x128xf32>
    tpu.vector_store %arg4[%c0_28, %c0_29, %c0_30], %96 {strides = array<i32>} : memref<1x8x128xf32, #tpu.memory_space<vmem>>, vector<1x8x128xf32>,
    return
  }
  func.func @transform_0(%arg0: i32) -> (i32, i32, i32) {
    %c0_i32 = arith.constant 0 : i32
    %c0_i32_0 = arith.constant 0 : i32
    %c0_i32_1 = arith.constant 0 : i32
    return %arg0, %c0_i32, %c0_i32_0 : i32, i32, i32
  }
  func.func @transform_1(%arg0: i32) -> (i32, i32, i32) {
    %c0_i32 = arith.constant 0 : i32
    %c0_i32_0 = arith.constant 0 : i32
    %c0_i32_1 = arith.constant 0 : i32
    return %arg0, %c0_i32, %c0_i32_0 : i32, i32, i32
  }
  func.func @transform_2(%arg0: i32) -> (i32, i32, i32) {
    %c0_i32 = arith.constant 0 : i32
    %c0_i32_0 = arith.constant 0 : i32
    %c0_i32_1 = arith.constant 0 : i32
    return %arg0, %c0_i32, %c0_i32_0 : i32, i32, i32
  }
  func.func @transform_3(%arg0: i32) -> (i32, i32, i32) {
    %c0_i32 = arith.constant 0 : i32
    %c0_i32_0 = arith.constant 0 : i32
    %c0_i32_1 = arith.constant 0 : i32
    return %arg0, %c0_i32, %c0_i32_0 : i32, i32, i32
  }
}

</mosaic_0001>

<llo_original>
// kernel: tpu_custom_call.1
$region0: #{tpu_custom_call.1}
  #allocation0 [shape = 'u32[]', space=smem, size = 0x4, offset = 0x4, fixed_abs, tag = 'smem constant byte address 0x4 - core index']
  #allocation1 [shape = 'u32[144,128]{1,0:T(1,128)}', space=vmem, size = 0x12000, scoped, tag = 'internal scratch']
  %s0 = inlined_call_operand.hbm [shape: f32[2,32,128], index: 0, kind: input, shape index: {}]
  %s1 = inlined_call_operand.hbm [shape: f32[2,32,128], index: 1, kind: input, shape index: {}]
  %s2 = inlined_call_operand.hbm [shape: s8[2,32,128], index: 2, kind: input, shape index: {}]
  %s3 = inlined_call_operand.hbm [shape: f32[2,8,128], index: 3, kind: output, shape index: {}]
  %s4 = sld [smem:[#allocation0]]
  $region57: #{tpu_custom_call.1} parent=0
    _
  %s6 = ssub.s32 1, %s4
  %s7 = scalar_select 0, %s6, %s4
  $region1: #{tpu_custom_call.1} parent=0
    #allocation2 [shape = 'u8[32768]{0}', space=vmem, size = 0x8000, scoped, tag = 'input window, operand 0']
    #allocation3 [shape = 's32[2]{0}', space=sflag, size = 0x8, scoped, tag = 'scoped memory for tpu_custom_call.1']
    #allocation4 [shape = 's32[2]{0}', space=sflag, size = 0x8, scoped, tag = 'scoped memory for tpu_custom_call.1']
    #allocation5 [shape = 'u8[32768]{0}', space=vmem, size = 0x8000, scoped, tag = 'input window, operand 1']
    #allocation6 [shape = 's32[2]{0}', space=sflag, size = 0x8, scoped, tag = 'scoped memory for tpu_custom_call.1']
    #allocation7 [shape = 'u8[8192]{0}', space=vmem, size = 0x2000, scoped, tag = 'input window, operand 2']
    #allocation8 [shape = 'u8[8192]{0}', space=vmem, size = 0x2000, scoped, tag = 'output window, operand 0']
    %8 = vsyncpa [#allocation3], 0
    %s9 = scalar_lea.sflag [#allocation3], 1
    %10 = vsyncpa %s9, 0
    %11 = vsyncpa [#allocation6], 0
    %s12 = scalar_lea.sflag [#allocation6], 1
    %13 = vsyncpa %s12, 0
    %14 = vsyncpa [#allocation4], 0
    %s15 = scalar_lea.sflag [#allocation4], 1
    %16 = vsyncpa %s15, 0
    loop: start=0, step=1, limit=4
    $region2: #{tpu_custom_call.1} parent=1 // loop_pre_header
      _
    $region3: #{tpu_custom_call.1} parent=1 // loop_header
      %s18 = sphi 0, %s22
      %p19 = scmp.ge.s32.totalorder %s18, 4
      %s28 = sphi 0, %s30
      %s31 = sphi 0, %s28
      %s32 = sphi 0, %s31
      %s48 = sphi 0, %s32
      %s54 = sphi 0, %s56
      %s57 = sphi 0, %s54
      %s58 = sphi 0, %s57
      %s74 = sphi 0, %s58
      %s80 = sphi 0, %s82
      %s83 = sphi 0, %s80
      %s84 = sphi 0, %s83
      %s100 = sphi 0, %s84
      %s106 = sphi 0, %s108
      %s109 = sphi 0, %s106
      %s110 = sphi 0, %s109
      %s126 = sphi 0, %s110
    $region4: #{tpu_custom_call.1} parent=1 // loop_header_branch
      %21 = sbr.rel (%p19) target = $region8
    $region5: #{tpu_custom_call.1} parent=1 // loop_body
      %s23 = ssub.s32 %s18, 1
      %s24 = ssub.s32 %s18, 2
      %s25 = sadd.s32 %s18, 1
      %s26 = ssub.s32 %s18, %s25
      %p27 = scmp.eq.s32.totalorder %s26, 0
      %s29 = sadd.s32 %s28, 1
      %s30 = scalar_select %p27, %s28, %s29
      %p33 = pneg %p27
      %p34 = scmp.eq.s32.totalorder %s18, 1
      %p35 = por %p33, %p34
      %p36 = scmp.ne.s32.totalorder %s28, %s31
      %p37 = scmp.eq.s32.totalorder %s18, 0
      %p38 = por %p36, %p37
      %p39 = scmp.ne.s32.totalorder %s28, %s31
      %p40 = scmp.eq.s32.totalorder %s23, 1
      %p41 = por %p39, %p40
      %p42 = scmp.ne.s32.totalorder %s31, %s32
      %p43 = scmp.eq.s32.totalorder %s23, 0
      %p44 = por %p42, %p43
      %p45 = scmp.ne.s32.totalorder %s31, %s32
      %p46 = scmp.eq.s32.totalorder %s24, 1
      %p47 = por %p45, %p46
      %p49 = scmp.ne.s32.totalorder %s32, %s48
      %p50 = scmp.eq.s32.totalorder %s24, 0
      %p51 = por %p49, %p50
      %s52 = ssub.s32 %s18, %s25
      %p53 = scmp.eq.s32.totalorder %s52, 0
      %s55 = sadd.s32 %s54, 1
      %s56 = scalar_select %p53, %s54, %s55
      %p59 = pneg %p53
      %p60 = scmp.eq.s32.totalorder %s18, 1
      %p61 = por %p59, %p60
      %p62 = scmp.ne.s32.totalorder %s54, %s57
      %p63 = scmp.eq.s32.totalorder %s18, 0
      %p64 = por %p62, %p63
      %p65 = scmp.ne.s32.totalorder %s54, %s57
      %p66 = scmp.eq.s32.totalorder %s23, 1
      %p67 = por %p65, %p66
      %p68 = scmp.ne.s32.totalorder %s57, %s58
      %p69 = scmp.eq.s32.totalorder %s23, 0
      %p70 = por %p68, %p69
      %p71 = scmp.ne.s32.totalorder %s57, %s58
      %p72 = scmp.eq.s32.totalorder %s24, 1
      %p73 = por %p71, %p72
      %p75 = scmp.ne.s32.totalorder %s58, %s74
      %p76 = scmp.eq.s32.totalorder %s24, 0
      %p77 = por %p75, %p76
      %s78 = ssub.s32 %s18, %s25
      %p79 = scmp.eq.s32.totalorder %s78, 0
      %s81 = sadd.s32 %s80, 1
      %s82 = scalar_select %p79, %s80, %s81
      %p85 = pneg %p79
      %p86 = scmp.eq.s32.totalorder %s18, 1
      %p87 = por %p85, %p86
      %p88 = scmp.ne.s32.totalorder %s80, %s83
      %p89 = scmp.eq.s32.totalorder %s18, 0
      %p90 = por %p88, %p89
      %p91 = scmp.ne.s32.totalorder %s80, %s83
      %p92 = scmp.eq.s32.totalorder %s23, 1
      %p93 = por %p91, %p92
      %p94 = scmp.ne.s32.totalorder %s83, %s84
      %p95 = scmp.eq.s32.totalorder %s23, 0
      %p96 = por %p94, %p95
      %p97 = scmp.ne.s32.totalorder %s83, %s84
      %p98 = scmp.eq.s32.totalorder %s24, 1
      %p99 = por %p97, %p98
      %p101 = scmp.ne.s32.totalorder %s84, %s100
      %p102 = scmp.eq.s32.totalorder %s24, 0
      %p103 = por %p101, %p102
      %s104 = ssub.s32 %s18, %s25
      %p105 = scmp.eq.s32.totalorder %s104, 0
      %s107 = sadd.s32 %s106, 1
      %s108 = scalar_select %p105, %s106, %s107
      %p111 = pneg %p105
      %p112 = scmp.eq.s32.totalorder %s18, 1
      %p113 = por %p111, %p112
      %p114 = scmp.ne.s32.totalorder %s106, %s109
      %p115 = scmp.eq.s32.totalorder %s18, 0
      %p116 = por %p114, %p115
      %p117 = scmp.ne.s32.totalorder %s106, %s109
      %p118 = scmp.eq.s32.totalorder %s23, 1
      %p119 = por %p117, %p118
      %p120 = scmp.ne.s32.totalorder %s109, %s110
      %p121 = scmp.eq.s32.totalorder %s23, 0
      %p122 = por %p120, %p121
      %p123 = scmp.ne.s32.totalorder %s109, %s110
      %p124 = scmp.eq.s32.totalorder %s24, 1
      %p125 = por %p123, %p124
      %p127 = scmp.ne.s32.totalorder %s110, %s126
      %p128 = scmp.eq.s32.totalorder %s24, 0
      %p129 = por %p127, %p128
      %p130 = scmp.le.s32.totalorder 1, %s18
      %p131 = scmp.lt.s32.totalorder %s18, 3
      %p132 = pnand %p130, %p131
      %p133 = pneg %p132
      // Predicated region
      $region9: #{tpu_custom_call.1} parent=5 // pred_check
        _
      $region10: #{tpu_custom_call.1} parent=5 // pred_check_branch
        %135 = sbr.rel (%p132) target = $region12
      $region11: #{tpu_custom_call.1} parent=5 // pred_region
        %s136 = ssub.s32 %s18, 1
      $region12: #{tpu_custom_call.1} parent=5 // pred_fallthru
        _
      %p137 = scmp.lt.s32.totalorder %s18, 2
      // Predicated region
      $region13: #{tpu_custom_call.1} parent=5 // pred_check
        %p138 = pneg %p137
      $region14: #{tpu_custom_call.1} parent=5 // pred_check_branch
        %140 = sbr.rel (%p138) target = $region16
      $region15: #{tpu_custom_call.1} parent=5 // pred_region
        // Predicated region
        $region17: #{tpu_custom_call.1} parent=15 // pred_check
          %p141 = pneg %p38
        $region18: #{tpu_custom_call.1} parent=15 // pred_check_branch
          %143 = sbr.rel (%p141) target = $region20
        $region19: #{tpu_custom_call.1} parent=15 // pred_region
          %s144 = sand.u32 %s28, 1
          %s145 = scalar_lea.sflag [#allocation3], %s144
          %s146 = sand.u32 %s28, 1
          %s147 = smul.addr %s146, 32
          %s148 = scalar_lea.vmem [#allocation2], %s147
          %s150 = ssub.s32 512, 512
          %151 = vsyncadd %s145, %s150
          %s152 = smul.addr %s18, 4
          %s153 = smul.addr %s152, 128
          %s154 = scalar_lea.hbm %s0, %s153
          %s155 = sshll.u32 %s148, 4
          %s156 = int_to_ptr.vmem [resolvable:$true] %s155
          %161 = dma.hbm_to_vmem [thread:$0]  %s154, 512, %s156, %s145, 128, 128, 8
        $region20: #{tpu_custom_call.1} parent=15 // pred_fallthru
          _
        // Predicated region
        $region21: #{tpu_custom_call.1} parent=15 // pred_check
          %p162 = pneg %p64
        $region22: #{tpu_custom_call.1} parent=15 // pred_check_branch
          %164 = sbr.rel (%p162) target = $region24
        $region23: #{tpu_custom_call.1} parent=15 // pred_region
          %s165 = sand.u32 %s18, 1
          %s166 = scalar_lea.sflag [#allocation6], %s165
          %s167 = sand.u32 %s54, 1
          %s168 = smul.addr %s167, 32
          %s169 = scalar_lea.vmem [#allocation5], %s168
          %s171 = ssub.s32 512, 512
          %172 = vsyncadd %s166, %s171
          %s173 = smul.addr %s18, 4
          %s174 = smul.addr %s173, 128
          %s175 = scalar_lea.hbm %s1, %s174
          %s176 = sshll.u32 %s169, 4
          %s177 = int_to_ptr.vmem [resolvable:$true] %s176
          %182 = dma.hbm_to_vmem [thread:$0]  %s175, 512, %s177, %s166, 128, 128, 8
        $region24: #{tpu_custom_call.1} parent=15 // pred_fallthru
          _
        // Predicated region
        $region25: #{tpu_custom_call.1} parent=15 // pred_check
          %p183 = pneg %p90
        $region26: #{tpu_custom_call.1} parent=15 // pred_check_branch
          %185 = sbr.rel (%p183) target = $region28
        $region27: #{tpu_custom_call.1} parent=15 // pred_region
          %s186 = sand.u32 %s18, 1
          %s187 = scalar_lea.sflag [#allocation6], %s186
          %s188 = sand.u32 %s80, 1
          %s189 = smul.addr %s188, 8
          %s190 = scalar_lea.vmem [#allocation7], %s189
          %s192 = ssub.s32 128, 128
          %193 = vsyncadd %s187, %s192
          %s194 = smul.addr %s18, 128
          %s195 = scalar_lea.hbm %s2, %s194
          %s197 = sshll.u32 %s190, 4
          %s198 = int_to_ptr.vmem [resolvable:$true] %s197
          %200 = dma.hbm_to_vmem [thread:$0]  %s195, 128, %s198, %s187
        $region28: #{tpu_custom_call.1} parent=15 // pred_fallthru
          _
      $region16: #{tpu_custom_call.1} parent=5 // pred_fallthru
        _
      %p201 = scmp.le.s32.totalorder 1, %s18
      %p202 = scmp.lt.s32.totalorder %s18, 3
      %p203 = pnand %p201, %p202
      %p204 = pneg %p203
      // Predicated region
      $region29: #{tpu_custom_call.1} parent=5 // pred_check
        _
      $region30: #{tpu_custom_call.1} parent=5 // pred_check_branch
        %206 = sbr.rel (%p203) target = $region32
      $region31: #{tpu_custom_call.1} parent=5 // pred_region
        %s207 = ssub.s32 %s18, 1
        %s208 = sand.u32 %s31, 1
        %s209 = scalar_lea.sflag [#allocation3], %s208
        %s210 = sand.u32 %s31, 1
        %s211 = smul.addr %s210, 32
        %s212 = scalar_lea.vmem [#allocation2], %s211
        // Predicated region
        $region33: #{tpu_custom_call.1} parent=31 // pred_check
          %p213 = pneg %p44
        $region34: #{tpu_custom_call.1} parent=31 // pred_check_branch
          %215 = sbr.rel (%p213) target = $region36
        $region35: #{tpu_custom_call.1} parent=31 // pred_region
          %216 = dma.done %s209, 512
        $region36: #{tpu_custom_call.1} parent=31 // pred_fallthru
          _
        %s217 = sand.u32 %s23, 1
        %s218 = scalar_lea.sflag [#allocation6], %s217
        %s219 = sand.u32 %s57, 1
        %s220 = smul.addr %s219, 32
        %s221 = scalar_lea.vmem [#allocation5], %s220
        // Predicated region
        $region37: #{tpu_custom_call.1} parent=31 // pred_check
          %p222 = pneg %p70
        $region38: #{tpu_custom_call.1} parent=31 // pred_check_branch
          %224 = sbr.rel (%p222) target = $region40
        $region39: #{tpu_custom_call.1} parent=31 // pred_region
          %225 = dma.done %s218, 512
        $region40: #{tpu_custom_call.1} parent=31 // pred_fallthru
          _
        %s226 = sand.u32 %s23, 1
        %s227 = scalar_lea.sflag [#allocation6], %s226
        %s228 = sand.u32 %s83, 1
        %s229 = smul.addr %s228, 8
        %s230 = scalar_lea.vmem [#allocation7], %s229
        // Predicated region
        $region41: #{tpu_custom_call.1} parent=31 // pred_check
          %p231 = pneg %p96
        $region42: #{tpu_custom_call.1} parent=31 // pred_check_branch
          %233 = sbr.rel (%p231) target = $region44
        $region43: #{tpu_custom_call.1} parent=31 // pred_region
          %234 = dma.done %s227, 128
        $region44: #{tpu_custom_call.1} parent=31 // pred_fallthru
          _
        %s235 = sand.u32 %s31, 1
        %s236 = scalar_lea.sflag [#allocation3], %s235
        %s237 = sand.u32 %s31, 1
        %s238 = smul.addr %s237, 32
        %s239 = scalar_lea.vmem [#allocation2], %s238
        %p240 = pneg %p44
        %p241 = pneg %p41
        %s242 = sand.u32 %s23, 1
        %s243 = scalar_lea.sflag [#allocation6], %s242
        %s244 = sand.u32 %s57, 1
        %s245 = smul.addr %s244, 32
        %s246 = scalar_lea.vmem [#allocation5], %s245
        %p247 = pneg %p70
        %p248 = pneg %p67
        %s249 = sand.u32 %s23, 1
        %s250 = scalar_lea.sflag [#allocation6], %s249
        %s251 = sand.u32 %s83, 1
        %s252 = smul.addr %s251, 8
        %s253 = scalar_lea.vmem [#allocation7], %s252
        %p254 = pneg %p96
        %p255 = pneg %p93
        %p256 = pneg %p122
        %p257 = pneg %p119
        %s258 = sand.u32 %s109, 1
        %s259 = scalar_lea.sflag [#allocation4], %s258
        %s260 = sand.u32 %s109, 1
        %s261 = smul.addr %s260, 8
        %s262 = scalar_lea.vmem [#allocation8], %s261
        %v263 = vld [vmem:[%s212] sm:$0xff]
        %v264 = vld [vmem:[%s212 + $0x8] sm:$0xff]
        %v265 = vld [vmem:[%s212 + $0x10] sm:$0xff]
        %v266 = vld [vmem:[%s212 + $0x18] sm:$0xff]
        %v267 = vld [vmem:[%s221] sm:$0xff]
        %v268 = vld [vmem:[%s221 + $0x8] sm:$0xff]
        %v269 = vld [vmem:[%s221 + $0x10] sm:$0xff]
        %v270 = vld [vmem:[%s221 + $0x18] sm:$0xff]
        %v271 = vld [vmem:[%s230] sm:$0xff]
        %v272 = vunpack.c.0.s8 %v271
        %v273 = vunpack.c.1.s8 %v271
        %v274 = vunpack.c.2.s8 %v271
        %v275 = vunpack.c.3.s8 %v271
        %v276 = vcvt.s32.f32 %v272
        %v277 = vcvt.s32.f32 %v273
        %v278 = vcvt.s32.f32 %v274
        %v279 = vcvt.s32.f32 %v275
        %v280 = vmul.f32 %v276, %v263
        %v281 = vmul.f32 %v277, %v264
        %v282 = vmul.f32 %v278, %v265
        %v283 = vmul.f32 %v279, %v266
        %v284 = vmul.f32 %v276, %v267
        %v285 = vmul.f32 %v277, %v268
        %v286 = vmul.f32 %v278, %v269
        %v287 = vmul.f32 %v279, %v270
        %v288 = vmul.f32 %v280, %v263
        %v289 = vmul.f32 %v281, %v264
        %v290 = vmul.f32 %v282, %v265
        %v291 = vmul.f32 %v283, %v266
        %v292 = vadd.f32 %v288, 0.0
        %v293 = vadd.f32 %v289, 0.0
        %v294 = vadd.f32 %v290, 0.0
        %v295 = vadd.f32 %v291, 0.0
        %v296 = vadd.f32 %v280, 0.0
        %v297 = vadd.f32 %v281, 0.0
        %v298 = vadd.f32 %v282, 0.0
        %v299 = vadd.f32 %v283, 0.0
        %v300 = vadd.f32 %v276, 0.0
        %v301 = vadd.f32 %v277, 0.0
        %v302 = vadd.f32 %v278, 0.0
        %v303 = vadd.f32 %v279, 0.0
        %v304 = vmul.f32 %v280, %v267
        %v305 = vmul.f32 %v281, %v268
        %v306 = vmul.f32 %v282, %v269
        %v307 = vmul.f32 %v283, %v270
        %v308 = vadd.f32 %v304, 0.0
        %v309 = vadd.f32 %v305, 0.0
        %v310 = vadd.f32 %v306, 0.0
        %v311 = vadd.f32 %v307, 0.0
        %v312 = vadd.f32 %v284, 0.0
        %v313 = vadd.f32 %v285, 0.0
        %v314 = vadd.f32 %v286, 0.0
        %v315 = vadd.f32 %v287, 0.0
        %v316 = vadd.f32 %v292, %v293
        %v317 = vadd.f32 %v316, %v294
        %v318 = vadd.f32 %v317, %v295
        %319 = vadd.xlane.f32.xlu0 %v318
        %v320 = vpop.xlane.xlu0 %319
        %v321 = vrot.slane %v320, 4
        %v322 = vadd.f32 %v320, %v321
        %v323 = vrot.slane %v322, 2
        %v324 = vadd.f32 %v322, %v323
        %v325 = vrot.slane %v324, 1
        %v326 = vadd.f32 %v324, %v325
        %s327 = vtos %v326
        %v328 = vadd.f32 %v296, %v297
        %v329 = vadd.f32 %v328, %v298
        %v330 = vadd.f32 %v329, %v299
        %331 = vadd.xlane.f32.xlu0 %v330
        %v332 = vpop.xlane.xlu0 %331
        %v333 = vrot.slane %v332, 4
        %v334 = vadd.f32 %v332, %v333
        %v335 = vrot.slane %v334, 2
        %v336 = vadd.f32 %v334, %v335
        %v337 = vrot.slane %v336, 1
        %v338 = vadd.f32 %v336, %v337
        %s339 = vtos %v338
        %v340 = vadd.f32 %v300, %v301
        %v341 = vadd.f32 %v340, %v302
        %v342 = vadd.f32 %v341, %v303
        %343 = vadd.xlane.f32.xlu0 %v342
        %v344 = vpop.xlane.xlu0 %343
        %v345 = vrot.slane %v344, 4
        %v346 = vadd.f32 %v344, %v345
        %v347 = vrot.slane %v346, 2
        %v348 = vadd.f32 %v346, %v347
        %v349 = vrot.slane %v348, 1
        %v350 = vadd.f32 %v348, %v349
        %s351 = vtos %v350
        %v352 = vadd.f32 %v308, %v309
        %v353 = vadd.f32 %v352, %v310
        %v354 = vadd.f32 %v353, %v311
        %355 = vadd.xlane.f32.xlu0 %v354
        %v356 = vpop.xlane.xlu0 %355
        %v357 = vrot.slane %v356, 4
        %v358 = vadd.f32 %v356, %v357
        %v359 = vrot.slane %v358, 2
        %v360 = vadd.f32 %v358, %v359
        %v361 = vrot.slane %v360, 1
        %v362 = vadd.f32 %v360, %v361
        %s363 = vtos %v362
        %v364 = vadd.f32 %v312, %v313
        %v365 = vadd.f32 %v364, %v314
        %v366 = vadd.f32 %v365, %v315
        %367 = vadd.xlane.f32.xlu0 %v366
        %v368 = vpop.xlane.xlu0 %367
        %v369 = vrot.slane %v368, 4
        %v370 = vadd.f32 %v368, %v369
        %v371 = vrot.slane %v370, 2
        %v372 = vadd.f32 %v370, %v371
        %v373 = vrot.slane %v372, 1
        %v374 = vadd.f32 %v372, %v373
        %s375 = vtos %v374
        %s376 = smul.f32 %s327, %s351
        %s377 = smul.f32 %s339, %s339
        %s378 = ssub.f32 %s376, %s377
        %p379 = scmp.gt.f32.partialorder %s378, 0.0
        %s380 = scalar_select %p379, %s378, 1.0
        %s381 = smul.f32 %s351, %s363
        %s382 = smul.f32 %s339, %s375
        %s383 = ssub.f32 %s381, %s382
        %v384 = vstv %s380
        %v385 = vrcp.pop %v384
        %s386 = vtos %v385
        %s387 = smul.f32 %s383, %s386
        %s388 = scalar_select %p379, %s387, 0.0
        %s389 = ssub.f32 0.0, %s339
        %s390 = smul.f32 %s389, %s363
        %s391 = smul.f32 %s327, %s375
        %s392 = sadd.f32 %s390, %s391
        %v393 = vstv %s380
        %v394 = vrcp.pop %v393
        %s395 = vtos %v394
        %s396 = smul.f32 %s392, %s395
        %s397 = scalar_select %p379, %s396, 0.0
        %v398 = vstv %s388
        %v399 = vstv %s397
        %v400 = vmul.f32 %v398, %v280
        %v401 = vmul.f32 %v398, %v281
        %v402 = vmul.f32 %v398, %v282
        %v403 = vmul.f32 %v398, %v283
        %v404 = vmul.f32 %v399, %v276
        %v405 = vmul.f32 %v399, %v277
        %v406 = vmul.f32 %v399, %v278
        %v407 = vmul.f32 %v399, %v279
        %v408 = vadd.f32 %v400, %v404
        %v409 = vadd.f32 %v401, %v405
        %v410 = vadd.f32 %v402, %v406
        %v411 = vadd.f32 %v403, %v407
        %v412 = vsub.f32 %v408, %v284
        %v413 = vsub.f32 %v409, %v285
        %v414 = vsub.f32 %v410, %v286
        %v415 = vsub.f32 %v411, %v287
        %v416 = vand.u32 2147483647, %v412
        %v417 = vand.u32 2147483647, %v413
        %v418 = vand.u32 2147483647, %v414
        %v419 = vand.u32 2147483647, %v415
        %v420 = vadd.f32 %v416, 0.0
        %v421 = vadd.f32 %v417, 0.0
        %v422 = vadd.f32 %v418, 0.0
        %v423 = vadd.f32 %v419, 0.0
        %v424 = vadd.f32 %v420, %v421
        %v425 = vadd.f32 %v424, %v422
        %v426 = vadd.f32 %v425, %v423
        %427 = vadd.xlane.f32.xlu0 %v426
        %v428 = vpop.xlane.xlu0 %427
        %v429 = vrot.slane %v428, 4
        %v430 = vadd.f32 %v428, %v429
        %v431 = vrot.slane %v430, 2
        %v432 = vadd.f32 %v430, %v431
        %v433 = vrot.slane %v432, 1
        %v434 = vadd.f32 %v432, %v433
        %s435 = vtos %v434
        %v436 = vlaneseq
        %v437 = vshrl.u32 %v436, 7
        %vm438 = vcmp.eq.s32.totalorder %v437, 0
        %vm439 = vcmp.eq.s32.totalorder %v437, 1
        %v440 = vstv %s351
        %v441 = vsel %vm439, %v440, 0.0
        %v442 = vstv %s435
        %v443 = vsel %vm438, %v442, %v441
        %444 = vst [vmem:[%s262] sm:$0xff] %v443
        %s445 = sand.u32 %s109, 1
        %s446 = scalar_lea.sflag [#allocation4], %s445
        %s447 = sand.u32 %s109, 1
        %s448 = smul.addr %s447, 8
        %s449 = scalar_lea.vmem [#allocation8], %s448
        // Predicated region
        $region45: #{tpu_custom_call.1} parent=31 // pred_check
          %p450 = pneg %p119
        $region46: #{tpu_custom_call.1} parent=31 // pred_check_branch
          %452 = sbr.rel (%p450) target = $region48
        $region47: #{tpu_custom_call.1} parent=31 // pred_region
          %s454 = ssub.s32 128, 128
          %455 = vsyncadd %s446, %s454
          %s456 = smul.addr %s23, 128
          %s457 = scalar_lea.hbm %s3, %s456
          %s459 = sshll.u32 %s449, 4
          %s460 = int_to_ptr.vmem [resolvable:$true] %s459
          %462 = dma.vmem_to_hbm [thread:$0]  %s460, 128, %s457, %s446
        $region48: #{tpu_custom_call.1} parent=31 // pred_fallthru
          _
      $region32: #{tpu_custom_call.1} parent=5 // pred_fallthru
        _
      %p463 = scmp.le.s32.totalorder 2, %s18
      // Predicated region
      $region49: #{tpu_custom_call.1} parent=5 // pred_check
        %p464 = pneg %p463
      $region50: #{tpu_custom_call.1} parent=5 // pred_check_branch
        %466 = sbr.rel (%p464) target = $region52
      $region51: #{tpu_custom_call.1} parent=5 // pred_region
        %s467 = ssub.s32 %s18, 2
        // Predicated region
        $region53: #{tpu_custom_call.1} parent=51 // pred_check
          %p468 = pneg %p125
        $region54: #{tpu_custom_call.1} parent=51 // pred_check_branch
          %470 = sbr.rel (%p468) target = $region56
        $region55: #{tpu_custom_call.1} parent=51 // pred_region
          %s471 = sand.u32 %s110, 1
          %s472 = scalar_lea.sflag [#allocation4], %s471
          %s473 = sand.u32 %s110, 1
          %s474 = smul.addr %s473, 8
          %s475 = scalar_lea.vmem [#allocation8], %s474
          %476 = dma.done %s472, 128
        $region56: #{tpu_custom_call.1} parent=51 // pred_fallthru
          _
      $region52: #{tpu_custom_call.1} parent=5 // pred_fallthru
        _
    $region6: #{tpu_custom_call.1} parent=1 // loop_footer
      %s22 = sadd.s32 1, %s18
    $region7: #{tpu_custom_call.1} parent=1 // loop_footer_branch
      %17 = sbr.rel target = $region3
    $region8: #{tpu_custom_call.1} parent=1 // loop_exit
      _
    %477 = vsyncpa [#allocation3], 1
    %s478 = scalar_lea.sflag [#allocation3], 1
    %479 = vsyncpa %s478, 1
    %480 = vsyncpa [#allocation6], 1
    %s481 = scalar_lea.sflag [#allocation6], 1
    %482 = vsyncpa %s481, 1
    %483 = vsyncpa [#allocation4], 1
    %s484 = scalar_lea.sflag [#allocation4], 1
    %485 = vsyncpa %s484, 1

</llo_original>
